<compile_context>
chip_gen: v7x
topology: tpu7x:2x2x1
jax: 0.10.0
libtpu: 0.0.40
codegen_flags: <defaults>
</compile_context>

<pallas_src>
import functools

import jax
import jax.numpy as jnp
from jax.experimental import pallas as pl
from jax.experimental.pallas import tpu as pltpu

LANE = 128


def _round_up(x, m):
    return ((x + m - 1) // m) * m


def dueling_dqn_kernel(obs_ref,
                       w1_ref, b1_ref,
                       w2_ref, b2_ref,
                       w3_ref, b3_ref,
                       wq_ref, bq_ref,
                       q_ref):
    """One batch tile of the fused DuelingDQN forward.

    obs_ref : [TILE_B, state_dim]   bf16
    wN_ref  : [in, out]             bf16 (VMEM-resident across grid steps)
    bN_ref  : [1, out]              fp32 (added to the fp32 accumulator)
    wq_ref  : [fc1, OUT_PAD]        bf16 fused dueling head (V + A - mean(A))
    bq_ref  : [1, OUT_PAD]          fp32
    q_ref   : [TILE_B, OUT_PAD]     fp32 (lane-dense output)
    """
    x = obs_ref[...]

    h = jnp.dot(x, w1_ref[...], preferred_element_type=jnp.float32) + b1_ref[...]
    h = jnp.maximum(h, 0.0).astype(jnp.bfloat16)

    h = jnp.dot(h, w2_ref[...], preferred_element_type=jnp.float32) + b2_ref[...]
    h = jnp.maximum(h, 0.0).astype(jnp.bfloat16)

    h = jnp.dot(h, w3_ref[...], preferred_element_type=jnp.float32) + b3_ref[...]
    h = jnp.maximum(h, 0.0).astype(jnp.bfloat16)

    # Fused dueling head: Q = h @ W_q + b_q  (V/A heads + mean folded in ahead
    # of time, so no [B,128]@[128,1] matmul and no cross-lane mean here).
    q_ref[...] = (jnp.dot(h, wq_ref[...], preferred_element_type=jnp.float32)
                  + bq_ref[...])


def prepare_params(raw_params):
    """Fuse the dueling heads into a single lane-padded linear layer and cast
    weights to bf16 (do this once, at parameter-update time)."""
    (w1, b1, w2, b2, w3, b3, wv, bv, wa, ba) = raw_params
    act_dim = wa.shape[1]
    out_pad = _round_up(act_dim, LANE)

    # Q = V + A - mean(A) is linear in h -> fold into one weight/bias.
    wq = wv + wa - jnp.mean(wa, axis=1, keepdims=True)   # [fc1, act_dim]
    bq = bv + ba - jnp.mean(ba, axis=1, keepdims=True)   # [1,   act_dim]
    wq = jnp.pad(wq, ((0, 0), (0, out_pad - act_dim)))   # lane-dense output
    bq = jnp.pad(bq, ((0, 0), (0, out_pad - act_dim)))

    bf16 = jnp.bfloat16
    fused = (w1.astype(bf16), b1.astype(jnp.float32),
             w2.astype(bf16), b2.astype(jnp.float32),
             w3.astype(bf16), b3.astype(jnp.float32),
             wq.astype(bf16), bq.astype(jnp.float32))
    return fused, act_dim


@functools.partial(jax.jit, static_argnames=("act_dim", "tile_b"))
def dueling_dqn_forward(obs, fused_params, *, act_dim, tile_b=256):
    """Gridded over the batch; weights stay resident in VMEM across steps."""
    (w1, b1, w2, b2, w3, b3, wq, bq) = fused_params
    batch, state_dim = obs.shape
    fc1 = w1.shape[1]
    out_pad = wq.shape[1]

    # bf16 packs 16 rows per vreg -> keep batch tiles a multiple of 16.
    tile_b = max(16, min(tile_b, _round_up(batch, 16)))
    padded_b = _round_up(batch, tile_b)

    x = obs.astype(jnp.bfloat16)
    if padded_b != batch:
        x = jnp.pad(x, ((0, padded_b - batch), (0, 0)))

    batch_map = lambda i: (i, 0)   # obs / out: walk the batch
    const_map = lambda i: (0, 0)   # weights / biases: same block every step

    q_padded = pl.pallas_call(
        dueling_dqn_kernel,
        out_shape=jax.ShapeDtypeStruct((padded_b, out_pad), jnp.float32),
        grid_spec=pltpu.PrefetchScalarGridSpec(
            num_scalar_prefetch=0,
            grid=(padded_b // tile_b,),
            in_specs=[
                pl.BlockSpec((tile_b, state_dim), batch_map),   # obs tile
                pl.BlockSpec((state_dim, fc1), const_map),      # w1
                pl.BlockSpec((1, fc1), const_map),              # b1
                pl.BlockSpec((fc1, fc1), const_map),            # w2
                pl.BlockSpec((1, fc1), const_map),              # b2
                pl.BlockSpec((fc1, fc1), const_map),            # w3
                pl.BlockSpec((1, fc1), const_map),              # b3
                pl.BlockSpec((fc1, out_pad), const_map),        # fused W_q
                pl.BlockSpec((1, out_pad), const_map),          # fused b_q
            ],
            out_specs=pl.BlockSpec((tile_b, out_pad), batch_map),
        ),
        compiler_params=pltpu.CompilerParams(
            dimension_semantics=("parallel",),   # megacore shard on v7x
        ),
    )(x, w1, b1, w2, b2, w3, b3, wq, bq)

    return q_padded[:batch, :act_dim]


def init_linear(key, fan_in, fan_out):
    """PyTorch nn.Linear default init: U(-1/sqrt(fan_in), 1/sqrt(fan_in)).
    Weight stored as [in, out] (transposed vs. torch's [out, in])."""
    kw, kb = jax.random.split(key)
    bound = 1.0 / jnp.sqrt(jnp.float32(fan_in))
    w = jax.random.uniform(kw, (fan_in, fan_out), jnp.float32, -bound, bound)
    b = jax.random.uniform(kb, (1, fan_out), jnp.float32, -bound, bound)
    return w, b


def reference_forward_fp32(obs, raw_params):
    """Plain-JAX fp32 reference of the PyTorch forward."""
    (w1, b1, w2, b2, w3, b3, wv, bv, wa, ba) = raw_params
    x = jnp.maximum(obs @ w1 + b1, 0.0)
    x = jnp.maximum(x @ w2 + b2, 0.0)
    x = jnp.maximum(x @ w3 + b3, 0.0)
    v = x @ wv + bv
    a = x @ wa + ba
    return v + a - jnp.mean(a, axis=-1, keepdims=True)


def reference_forward_fused(obs, fused_params, act_dim):
    """Plain-JAX reference of the exact bf16/fused math the kernel performs."""
    (w1, b1, w2, b2, w3, b3, wq, bq) = fused_params
    h = obs.astype(jnp.bfloat16)
    h = jnp.maximum(jnp.dot(h, w1, preferred_element_type=jnp.float32) + b1, 0.0).astype(jnp.bfloat16)
    h = jnp.maximum(jnp.dot(h, w2, preferred_element_type=jnp.float32) + b2, 0.0).astype(jnp.bfloat16)
    h = jnp.maximum(jnp.dot(h, w3, preferred_element_type=jnp.float32) + b3, 0.0).astype(jnp.bfloat16)
    q = jnp.dot(h, wq, preferred_element_type=jnp.float32) + bq
    return q[:, :act_dim]


if __name__ == "__main__":
    # Small shapes consistent with the module: a vector observation per sample.
    batch = 64
    state_dim = 16
    act_dim = 8
    fc1_dim = 128

    key = jax.random.PRNGKey(0)
    k_obs, k1, k2, k3, kv, ka = jax.random.split(key, 6)

    obs = jax.random.normal(k_obs, (batch, state_dim), jnp.float32)

    w1, b1 = init_linear(k1, state_dim, fc1_dim)
    w2, b2 = init_linear(k2, fc1_dim, fc1_dim)
    w3, b3 = init_linear(k3, fc1_dim, fc1_dim)
    wv, bv = init_linear(kv, fc1_dim, 1)
    wa, ba = init_linear(ka, fc1_dim, act_dim)

    raw_params = (w1, b1, w2, b2, w3, b3, wv, bv, wa, ba)
    fused_params, act_dim_out = prepare_params(raw_params)

    q = dueling_dqn_forward(obs, fused_params, act_dim=act_dim_out, tile_b=256)
    q = jax.block_until_ready(q)

    assert q.shape == (batch, act_dim)

    # Tight check against a plain-JAX replica of the kernel's bf16/fused math.
    q_bf16_ref = reference_forward_fused(obs, fused_params, act_dim_out)
    assert jnp.allclose(q, q_bf16_ref, atol=2e-3, rtol=2e-3), "mismatch vs bf16 reference"

    # Looser sanity check against the original fp32 (unfused) forward.
    q_fp32_ref = reference_forward_fp32(obs, raw_params)
    assert jnp.allclose(q, q_fp32_ref, atol=5e-2, rtol=5e-2), "mismatch vs fp32 reference"

    print("KERNEL_OK")
</pallas_src>

<mosaic_0001>
module attributes {stable_mosaic.version = 11 : i64} {
  func.func @dueling_dqn_kernel(%arg0: i32, %arg1: memref<64x16xbf16, #tpu.memory_space<vmem>>, %arg2: memref<16x128xbf16, #tpu.memory_space<vmem>>, %arg3: memref<1x128xf32, #tpu.memory_space<vmem>>, %arg4: memref<128x128xbf16, #tpu.memory_space<vmem>>, %arg5: memref<1x128xf32, #tpu.memory_space<vmem>>, %arg6: memref<128x128xbf16, #tpu.memory_space<vmem>>, %arg7: memref<1x128xf32, #tpu.memory_space<vmem>>, %arg8: memref<128x128xbf16, #tpu.memory_space<vmem>>, %arg9: memref<1x128xf32, #tpu.memory_space<vmem>>, %arg10: memref<64x128xf32, #tpu.memory_space<vmem>>) attributes {dimension_semantics = [#tpu.dimension_semantics<parallel>], iteration_bounds = array<i64: 1>, scalar_prefetch = 0 : i64, scratch_operands = 0 : i64, tpu.core_type = #tpu.core_type<tc>, window_params = [{transform_indices = @transform_0, window_bounds = array<i64: 64, 16>}, {pipeline_mode = #tpu.pipeline_mode<synchronous>, transform_indices = @transform_1, window_bounds = array<i64: 16, 128>}, {pipeline_mode = #tpu.pipeline_mode<synchronous>, transform_indices = @transform_2, window_bounds = array<i64: 1, 128>}, {pipeline_mode = #tpu.pipeline_mode<synchronous>, transform_indices = @transform_3, window_bounds = array<i64: 128, 128>}, {pipeline_mode = #tpu.pipeline_mode<synchronous>, transform_indices = @transform_4, window_bounds = array<i64: 1, 128>}, {pipeline_mode = #tpu.pipeline_mode<synchronous>, transform_indices = @transform_5, window_bounds = array<i64: 128, 128>}, {pipeline_mode = #tpu.pipeline_mode<synchronous>, transform_indices = @transform_6, window_bounds = array<i64: 1, 128>}, {pipeline_mode = #tpu.pipeline_mode<synchronous>, transform_indices = @transform_7, window_bounds = array<i64: 128, 128>}, {pipeline_mode = #tpu.pipeline_mode<synchronous>, transform_indices = @transform_8, window_bounds = array<i64: 1, 128>}, {transform_indices = @transform_9, window_bounds = array<i64: 64, 128>}]} {
    %c0 = arith.constant 0 : index
    %c0_0 = arith.constant 0 : index
    %0 = vector.load %arg1[%c0, %c0_0] : memref<64x16xbf16, #tpu.memory_space<vmem>>, vector<64x16xbf16>
    %c0_1 = arith.constant 0 : index
    %c0_2 = arith.constant 0 : index
    %1 = vector.load %arg2[%c0_1, %c0_2] : memref<16x128xbf16, #tpu.memory_space<vmem>>, vector<16x128xbf16>
    %cst = arith.constant dense<0.000000e+00> : vector<64x128xf32>
    %2 = tpu.matmul %0, %1, %cst {dimension_numbers = #tpu.dot_dimension_numbers<[1], [0], [0], [1], [0, 0, 1, 1], [], []>} : vector<64x16xbf16>, vector<16x128xbf16>, vector<64x128xf32> -> vector<64x128xf32>
    %c0_3 = arith.constant 0 : index
    %c0_4 = arith.constant 0 : index
    %3 = vector.load %arg3[%c0_3, %c0_4] : memref<1x128xf32, #tpu.memory_space<vmem>>, vector<1x128xf32>
    %4 = vector.broadcast %3 : vector<1x128xf32> to vector<64x128xf32>
    %5 = arith.addf %2, %4 : vector<64x128xf32>
    %cst_5 = arith.constant 0.000000e+00 : f32
    %6 = vector.broadcast %cst_5 : f32 to vector<64x128xf32>
    %7 = arith.maximumf %5, %6 : vector<64x128xf32>
    %8 = arith.truncf %7 : vector<64x128xf32> to vector<64x128xbf16>
    %c0_6 = arith.constant 0 : index
    %c0_7 = arith.constant 0 : index
    %9 = vector.load %arg4[%c0_6, %c0_7] : memref<128x128xbf16, #tpu.memory_space<vmem>>, vector<128x128xbf16>
    %cst_8 = arith.constant dense<0.000000e+00> : vector<64x128xf32>
    %10 = tpu.matmul %8, %9, %cst_8 {dimension_numbers = #tpu.dot_dimension_numbers<[1], [0], [0], [1], [0, 0, 1, 1], [], []>} : vector<64x128xbf16>, vector<128x128xbf16>, vector<64x128xf32> -> vector<64x128xf32>
    %c0_9 = arith.constant 0 : index
    %c0_10 = arith.constant 0 : index
    %11 = vector.load %arg5[%c0_9, %c0_10] : memref<1x128xf32, #tpu.memory_space<vmem>>, vector<1x128xf32>
    %12 = vector.broadcast %11 : vector<1x128xf32> to vector<64x128xf32>
    %13 = arith.addf %10, %12 : vector<64x128xf32>
    %cst_11 = arith.constant 0.000000e+00 : f32
    %14 = vector.broadcast %cst_11 : f32 to vector<64x128xf32>
    %15 = arith.maximumf %13, %14 : vector<64x128xf32>
    %16 = arith.truncf %15 : vector<64x128xf32> to vector<64x128xbf16>
    %c0_12 = arith.constant 0 : index
    %c0_13 = arith.constant 0 : index
    %17 = vector.load %arg6[%c0_12, %c0_13] : memref<128x128xbf16, #tpu.memory_space<vmem>>, vector<128x128xbf16>
    %cst_14 = arith.constant dense<0.000000e+00> : vector<64x128xf32>
    %18 = tpu.matmul %16, %17, %cst_14 {dimension_numbers = #tpu.dot_dimension_numbers<[1], [0], [0], [1], [0, 0, 1, 1], [], []>} : vector<64x128xbf16>, vector<128x128xbf16>, vector<64x128xf32> -> vector<64x128xf32>
    %c0_15 = arith.constant 0 : index
    %c0_16 = arith.constant 0 : index
    %19 = vector.load %arg7[%c0_15, %c0_16] : memref<1x128xf32, #tpu.memory_space<vmem>>, vector<1x128xf32>
    %20 = vector.broadcast %19 : vector<1x128xf32> to vector<64x128xf32>
    %21 = arith.addf %18, %20 : vector<64x128xf32>
    %cst_17 = arith.constant 0.000000e+00 : f32
    %22 = vector.broadcast %cst_17 : f32 to vector<64x128xf32>
    %23 = arith.maximumf %21, %22 : vector<64x128xf32>
    %24 = arith.truncf %23 : vector<64x128xf32> to vector<64x128xbf16>
    %c0_18 = arith.constant 0 : index
    %c0_19 = arith.constant 0 : index
    %25 = vector.load %arg8[%c0_18, %c0_19] : memref<128x128xbf16, #tpu.memory_space<vmem>>, vector<128x128xbf16>
    %cst_20 = arith.constant dense<0.000000e+00> : vector<64x128xf32>
    %26 = tpu.matmul %24, %25, %cst_20 {dimension_numbers = #tpu.dot_dimension_numbers<[1], [0], [0], [1], [0, 0, 1, 1], [], []>} : vector<64x128xbf16>, vector<128x128xbf16>, vector<64x128xf32> -> vector<64x128xf32>
    %c0_21 = arith.constant 0 : index
    %c0_22 = arith.constant 0 : index
    %27 = vector.load %arg9[%c0_21, %c0_22] : memref<1x128xf32, #tpu.memory_space<vmem>>, vector<1x128xf32>
    %28 = vector.broadcast %27 : vector<1x128xf32> to vector<64x128xf32>
    %29 = arith.addf %26, %28 : vector<64x128xf32>
    %c0_23 = arith.constant 0 : index
    %c0_24 = arith.constant 0 : index
    %30 = vector.load %arg10[%c0_23, %c0_24] : memref<64x128xf32, #tpu.memory_space<vmem>>, vector<64x128xf32>
    tpu.vector_store %arg10[%c0_23, %c0_24], %29 {strides = array<i32>} : memref<64x128xf32, #tpu.memory_space<vmem>>, vector<64x128xf32>,
    return
  }
  func.func @transform_0(%arg0: i32) -> (i32, i32) {
    %c0_i32 = arith.constant 0 : i32
    %c0_i32_0 = arith.constant 0 : i32
    return %arg0, %c0_i32 : i32, i32
  }
  func.func @transform_1(%arg0: i32) -> (i32, i32) {
    %c0_i32 = arith.constant 0 : i32
    %c0_i32_0 = arith.constant 0 : i32
    %c0_i32_1 = arith.constant 0 : i32
    return %c0_i32, %c0_i32_0 : i32, i32
  }
  func.func @transform_2(%arg0: i32) -> (i32, i32) {
    %c0_i32 = arith.constant 0 : i32
    %c0_i32_0 = arith.constant 0 : i32
    %c0_i32_1 = arith.constant 0 : i32
    return %c0_i32, %c0_i32_0 : i32, i32
  }
  func.func @transform_3(%arg0: i32) -> (i32, i32) {
    %c0_i32 = arith.constant 0 : i32
    %c0_i32_0 = arith.constant 0 : i32
    %c0_i32_1 = arith.constant 0 : i32
    return %c0_i32, %c0_i32_0 : i32, i32
  }
  func.func @transform_4(%arg0: i32) -> (i32, i32) {
    %c0_i32 = arith.constant 0 : i32
    %c0_i32_0 = arith.constant 0 : i32
    %c0_i32_1 = arith.constant 0 : i32
    return %c0_i32, %c0_i32_0 : i32, i32
  }
  func.func @transform_5(%arg0: i32) -> (i32, i32) {
    %c0_i32 = arith.constant 0 : i32
    %c0_i32_0 = arith.constant 0 : i32
    %c0_i32_1 = arith.constant 0 : i32
    return %c0_i32, %c0_i32_0 : i32, i32
  }
  func.func @transform_6(%arg0: i32) -> (i32, i32) {
    %c0_i32 = arith.constant 0 : i32
    %c0_i32_0 = arith.constant 0 : i32
    %c0_i32_1 = arith.constant 0 : i32
    return %c0_i32, %c0_i32_0 : i32, i32
  }
  func.func @transform_7(%arg0: i32) -> (i32, i32) {
    %c0_i32 = arith.constant 0 : i32
    %c0_i32_0 = arith.constant 0 : i32
    %c0_i32_1 = arith.constant 0 : i32
    return %c0_i32, %c0_i32_0 : i32, i32
  }
  func.func @transform_8(%arg0: i32) -> (i32, i32) {
    %c0_i32 = arith.constant 0 : i32
    %c0_i32_0 = arith.constant 0 : i32
    %c0_i32_1 = arith.constant 0 : i32
    return %c0_i32, %c0_i32_0 : i32, i32
  }
  func.func @transform_9(%arg0: i32) -> (i32, i32) {
    %c0_i32 = arith.constant 0 : i32
    %c0_i32_0 = arith.constant 0 : i32
    return %arg0, %c0_i32 : i32, i32
  }
}

</mosaic_0001>

<llo_original>
// kernel: dueling_dqn_forward.1
$region0: #{dueling_dqn_forward.1}
  #allocation0 [shape = 'u32[]', space=smem, size = 0x4, offset = 0x4, fixed_abs, tag = 'smem constant byte address 0x4 - core index']
  #allocation1 [shape = 'u32[144,128]{1,0:T(1,128)}', space=vmem, size = 0x12000, scoped, tag = 'internal scratch']
  %s0 = inlined_call_operand.vmem [shape: bf16[64,16], index: 0, kind: input, shape index: {}]
  %s1 = inlined_call_operand.vmem [shape: bf16[16,128], index: 1, kind: input, shape index: {}]
  %s2 = inlined_call_operand.vmem [shape: f32[1,128], index: 2, kind: input, shape index: {}]
  %s3 = inlined_call_operand.vmem [shape: bf16[128,128], index: 3, kind: input, shape index: {}]
  %s4 = inlined_call_operand.vmem [shape: f32[1,128], index: 4, kind: input, shape index: {}]
  %s5 = inlined_call_operand.hbm [shape: bf16[128,128], index: 5, kind: input, shape index: {}]
  %s6 = inlined_call_operand.vmem [shape: f32[1,128], index: 6, kind: input, shape index: {}]
  %s7 = inlined_call_operand.hbm [shape: bf16[128,128], index: 7, kind: input, shape index: {}]
  %s8 = inlined_call_operand.vmem [shape: f32[1,128], index: 8, kind: input, shape index: {}]
  %s9 = inlined_call_operand.vmem [shape: f32[64,128], index: 9, kind: output, shape index: {}]
  %s10 = sld [smem:[#allocation0]]
  $region54: #{dueling_dqn_forward.1} parent=0
    _
  %s12 = ssub.s32 1, %s10
  %s13 = scalar_select 0, %s12, %s10
  $region1: #{dueling_dqn_forward.1} parent=0
    #allocation2 [shape = 'u8[32768]{0}', space=vmem, size = 0x8000, scoped, tag = 'input window, operand 5, single buffered']
    #allocation3 [shape = 's32[1]{0}', space=sflag, size = 0x4, scoped, tag = 'scoped memory for dueling_dqn_forward.1']
    #allocation4 [shape = 'u8[32768]{0}', space=vmem, size = 0x8000, scoped, tag = 'input window, operand 7, single buffered']
    #allocation5 [shape = 's32[1]{0}', space=sflag, size = 0x4, scoped, tag = 'scoped memory for dueling_dqn_forward.1']
    %14 = vsyncpa [#allocation3], 0
    %15 = vsyncpa [#allocation5], 0
    // Predicated region
    $region2: #{dueling_dqn_forward.1} parent=1 // pred_check
      _
    $region3: #{dueling_dqn_forward.1} parent=1 // pred_check_branch
      %17 = sbr.rel (0) target = $region5
    $region4: #{dueling_dqn_forward.1} parent=1 // pred_region
      _
    $region5: #{dueling_dqn_forward.1} parent=1 // pred_fallthru
      _
    // Predicated region
    $region6: #{dueling_dqn_forward.1} parent=1 // pred_check
      _
    $region7: #{dueling_dqn_forward.1} parent=1 // pred_check_branch
      %19 = sbr.rel (0) target = $region9
    $region8: #{dueling_dqn_forward.1} parent=1 // pred_region
      _
    $region9: #{dueling_dqn_forward.1} parent=1 // pred_fallthru
      _
    // Predicated region
    $region10: #{dueling_dqn_forward.1} parent=1 // pred_check
      _
    $region11: #{dueling_dqn_forward.1} parent=1 // pred_check_branch
      %21 = sbr.rel (0) target = $region13
    $region12: #{dueling_dqn_forward.1} parent=1 // pred_region
      _
    $region13: #{dueling_dqn_forward.1} parent=1 // pred_fallthru
      _
    // Predicated region
    $region14: #{dueling_dqn_forward.1} parent=1 // pred_check
      _
    $region15: #{dueling_dqn_forward.1} parent=1 // pred_check_branch
      %23 = sbr.rel (0) target = $region17
    $region16: #{dueling_dqn_forward.1} parent=1 // pred_region
      _
    $region17: #{dueling_dqn_forward.1} parent=1 // pred_fallthru
      _
    // Predicated region
    $region18: #{dueling_dqn_forward.1} parent=1 // pred_check
      _
    $region19: #{dueling_dqn_forward.1} parent=1 // pred_check_branch
      %25 = sbr.rel (0) target = $region21
    $region20: #{dueling_dqn_forward.1} parent=1 // pred_region
      _
    $region21: #{dueling_dqn_forward.1} parent=1 // pred_fallthru
      _
    // Predicated region
    $region22: #{dueling_dqn_forward.1} parent=1 // pred_check
      _
    $region23: #{dueling_dqn_forward.1} parent=1 // pred_check_branch
      %27 = sbr.rel (0) target = $region25
    $region24: #{dueling_dqn_forward.1} parent=1 // pred_region
      %s29 = ssub.s32 1024, 1024
      %30 = vsyncadd [#allocation3], %s29
      %s31 = sshll.u32 [#allocation2], 4
      %s32 = int_to_ptr.vmem [resolvable:$true] %s31
      %37 = dma.hbm_to_vmem [thread:$0]  %s5, 1024, %s32, [#allocation3], 64, 64, 4
    $region25: #{dueling_dqn_forward.1} parent=1 // pred_fallthru
      _
    // Predicated region
    $region26: #{dueling_dqn_forward.1} parent=1 // pred_check
      _
    $region27: #{dueling_dqn_forward.1} parent=1 // pred_check_branch
      %39 = sbr.rel (0) target = $region29
    $region28: #{dueling_dqn_forward.1} parent=1 // pred_region
      _
    $region29: #{dueling_dqn_forward.1} parent=1 // pred_fallthru
      _
    // Predicated region
    $region30: #{dueling_dqn_forward.1} parent=1 // pred_check
      _
    $region31: #{dueling_dqn_forward.1} parent=1 // pred_check_branch
      %41 = sbr.rel (0) target = $region33
    $region32: #{dueling_dqn_forward.1} parent=1 // pred_region
      %s43 = ssub.s32 1024, 1024
      %44 = vsyncadd [#allocation5], %s43
      %s45 = sshll.u32 [#allocation4], 4
      %s46 = int_to_ptr.vmem [resolvable:$true] %s45
      %51 = dma.hbm_to_vmem [thread:$0]  %s7, 1024, %s46, [#allocation5], 64, 64, 4
    $region33: #{dueling_dqn_forward.1} parent=1 // pred_fallthru
      _
    // Predicated region
    $region34: #{dueling_dqn_forward.1} parent=1 // pred_check
      _
    $region35: #{dueling_dqn_forward.1} parent=1 // pred_check_branch
      %53 = sbr.rel (0) target = $region37
    $region36: #{dueling_dqn_forward.1} parent=1 // pred_region
      _
    $region37: #{dueling_dqn_forward.1} parent=1 // pred_fallthru
      _
    // Predicated region
    $region38: #{dueling_dqn_forward.1} parent=1 // pred_check
      _
    $region39: #{dueling_dqn_forward.1} parent=1 // pred_check_branch
      %55 = sbr.rel (0) target = $region41
    $region40: #{dueling_dqn_forward.1} parent=1 // pred_region
      %56 = dma.done [#allocation3], 1024
    $region41: #{dueling_dqn_forward.1} parent=1 // pred_fallthru
      _
    // Predicated region
    $region42: #{dueling_dqn_forward.1} parent=1 // pred_check
      _
    $region43: #{dueling_dqn_forward.1} parent=1 // pred_check_branch
      %58 = sbr.rel (0) target = $region45
    $region44: #{dueling_dqn_forward.1} parent=1 // pred_region
      %59 = dma.done [#allocation5], 1024
    $region45: #{dueling_dqn_forward.1} parent=1 // pred_fallthru
      _
    %v61 = vld [vmem:[%s0] sm:$0xf]
    %v62 = vld [vmem:[%s0 + $0x4] sm:$0xf]
    %v63 = vld [vmem:[%s0 + $0x8] sm:$0xf]
    %v64 = vld [vmem:[%s0 + $0xc] sm:$0xf]
    %v65 = vld [vmem:[%s0 + $0x10] sm:$0xf]
    %v66 = vld [vmem:[%s0 + $0x14] sm:$0xf]
    %v67 = vld [vmem:[%s0 + $0x18] sm:$0xf]
    %v68 = vld [vmem:[%s0 + $0x1c] sm:$0xf]
    %v69 = vld [vmem:[%s1] sm:$0xf]
    %v70 = vld [vmem:[%s1 + $0x4] sm:$0xf]
    %v71 = vld [vmem:[%s2] sm:$0x1]
    %v73 = vlaneseq
    %v74 = vshrl.u32 %v73, 7
    %v75 = vsub.s32 0, %v74
    %v76 = vrot.slane %v71, %v75
    %v86 = vunpack.c.l.b16 %v61
    %v87 = vunpack.c.l.b16 %v62
    %v88 = vunpack.c.l.b16 %v63
    %v89 = vunpack.c.l.b16 %v64
    %v90 = vunpack.c.l.b16 %v65
    %v91 = vunpack.c.l.b16 %v66
    %v92 = vunpack.c.l.b16 %v67
    %v93 = vunpack.c.l.b16 %v68
    %v94 = vpack.c.b16 %v87, %v86
    %v95 = vpack.c.b16 %v89, %v88
    %v96 = vpack.c.b16 %v91, %v90
    %v97 = vpack.c.b16 %v93, %v92
    %v100 = vunpack.c.l.b16 %v69
    %v101 = vunpack.c.l.b16 %v70
    %v102 = vpack.c.b16 %v101, %v100
    %vm104 = vcmask 130048
    %v106 = vsel %vm104, %v94, 0
    %v109 = vsel %vm104, %v95, 0
    %v112 = vsel %vm104, %v96, 0
    %v115 = vsel %vm104, %v97, 0
    %117 = vmatprep.subr.bf16.mxu0 0
    %118 = vmatpush1.bf16.msra.mxu0 %v102
    %119 = vmatprep.subr.bf16.mxu0 0
    %120 = vmatpush1.bf16.msra.mxu0 0
    %121 = vmatprep.subr.bf16.mxu0 0
    %122 = vmatpush1.bf16.msra.mxu0 0
    %123 = vmatprep.subr.bf16.mxu0 0
    %124 = vmatpush1.bf16.msra.mxu0 0
    %125 = vmatprep.subr.bf16.mxu0 0
    %126 = vmatpush1.bf16.msra.mxu0 0
    %127 = vmatprep.subr.bf16.mxu0 0
    %128 = vmatpush1.bf16.msra.mxu0 0
    %129 = vmatprep.subr.bf16.mxu0 0
    %130 = vmatpush1.bf16.msra.mxu0 0
    %131 = vmatprep.subr.bf16.mxu0 0
    %132 = vmatpush1.bf16.msra.mxu0 0
    %133 = vmatprep.subr.bf16.mxu0 0
    %134 = vmatpush1.bf16.msra.mxu0 0
    %135 = vmatprep.subr.bf16.mxu0 0
    %136 = vmatpush1.bf16.msra.mxu0 0
    %137 = vmatprep.subr.bf16.mxu0 0
    %138 = vmatpush1.bf16.msra.mxu0 0
    %139 = vmatprep.subr.bf16.mxu0 0
    %140 = vmatpush1.bf16.msra.mxu0 0
    %141 = vmatprep.subr.bf16.mxu0 0
    %142 = vmatpush1.bf16.msra.mxu0 0
    %143 = vmatprep.subr.bf16.mxu0 0
    %144 = vmatpush1.bf16.msra.mxu0 0
    %145 = vmatprep.subr.bf16.mxu0 0
    %146 = vmatpush1.bf16.msra.mxu0 0
    %147 = vmatprep.subr.bf16.mxu0 0
    %148 = vmatpush1.bf16.msra.mxu0 0
    %149 = vmatprep.mubr.bf16.mxu0 0
    %150 = vmatmul.mubr.bf16.gmra.mrb[0].mxu0 %v106
    %v151 = vpop.f32.mrb[0].mxu0
    %v152 = vadd.f32 %v76, %v151
    %v153 = vpop.f32.mrb[0].mxu0
    %v154 = vpop.f32.mrb[0].mxu0
    %v155 = vadd.f32 %v76, %v154
    %v156 = vpop.f32.mrb[0].mxu0
    %157 = vmatprep.mubr.bf16.mxu0 0
    %158 = vmatmul.mubr.bf16.gmra.mrb[0].mxu0 %v109
    %v159 = vpop.f32.mrb[0].mxu0
    %v160 = vadd.f32 %v76, %v159
    %v161 = vpop.f32.mrb[0].mxu0
    %v162 = vpop.f32.mrb[0].mxu0
    %v163 = vadd.f32 %v76, %v162
    %v164 = vpop.f32.mrb[0].mxu0
    %165 = vmatprep.mubr.bf16.mxu0 0
    %166 = vmatmul.mubr.bf16.gmra.mrb[0].mxu0 %v112
    %v167 = vpop.f32.mrb[0].mxu0
    %v168 = vadd.f32 %v76, %v167
    %v169 = vpop.f32.mrb[0].mxu0
    %v170 = vpop.f32.mrb[0].mxu0
    %v171 = vadd.f32 %v76, %v170
    %v172 = vpop.f32.mrb[0].mxu0
    %173 = vmatprep.mubr.bf16.mxu0 0
    %174 = vmatmul.mubr.bf16.gmra.mrb[0].mxu0 %v115
    %v175 = vpop.f32.mrb[0].mxu0
    %v176 = vadd.f32 %v76, %v175
    %v177 = vpop.f32.mrb[0].mxu0
    %v178 = vpop.f32.mrb[0].mxu0
    %v179 = vadd.f32 %v76, %v178
    %v180 = vpop.f32.mrb[0].mxu0
    %181 = vdwg.mxu0
    %v182 = vmax.f32 %v152, 0.0
    %v183 = vmax.f32 %v155, 0.0
    %v184 = vmax.f32 %v160, 0.0
    %v185 = vmax.f32 %v163, 0.0
    %v186 = vmax.f32 %v168, 0.0
    %v187 = vmax.f32 %v171, 0.0
    %v188 = vmax.f32 %v176, 0.0
    %v189 = vmax.f32 %v179, 0.0
    %v190 = vpack.c.bf16 %v183, %v182
    %v191 = vpack.c.bf16 %v185, %v184
    %v192 = vpack.c.bf16 %v187, %v186
    %v193 = vpack.c.bf16 %v189, %v188
    %v194 = vld [vmem:[%s3] sm:$0xf]
    %v195 = vld [vmem:[%s3 + $0x4] sm:$0xf]
    %v196 = vld [vmem:[%s3 + $0x8] sm:$0xf]
    %v197 = vld [vmem:[%s3 + $0xc] sm:$0xf]
    %v198 = vld [vmem:[%s3 + $0x10] sm:$0xf]
    %v199 = vld [vmem:[%s3 + $0x14] sm:$0xf]
    %v200 = vld [vmem:[%s3 + $0x18] sm:$0xf]
    %v201 = vld [vmem:[%s3 + $0x1c] sm:$0xf]
    %v202 = vld [vmem:[%s3 + $0x20] sm:$0xf]
    %v203 = vld [vmem:[%s3 + $0x24] sm:$0xf]
    %v204 = vld [vmem:[%s3 + $0x28] sm:$0xf]
    %v205 = vld [vmem:[%s3 + $0x2c] sm:$0xf]
    %v206 = vld [vmem:[%s3 + $0x30] sm:$0xf]
    %v207 = vld [vmem:[%s3 + $0x34] sm:$0xf]
    %v208 = vld [vmem:[%s3 + $0x38] sm:$0xf]
    %v209 = vld [vmem:[%s3 + $0x3c] sm:$0xf]
    %v210 = vld [vmem:[%s4] sm:$0x1]
    %v212 = vlaneseq
    %v213 = vshrl.u32 %v212, 7
    %v214 = vsub.s32 0, %v213
    %v215 = vrot.slane %v210, %v214
    %v233 = vunpack.c.l.b16 %v194
    %v234 = vunpack.c.l.b16 %v195
    %v235 = vunpack.c.l.b16 %v196
    %v236 = vunpack.c.l.b16 %v197
    %v237 = vunpack.c.l.b16 %v198
    %v238 = vunpack.c.l.b16 %v199
    %v239 = vunpack.c.l.b16 %v200
    %v240 = vunpack.c.l.b16 %v201
    %v241 = vunpack.c.l.b16 %v202
    %v242 = vunpack.c.l.b16 %v203
    %v243 = vunpack.c.l.b16 %v204
    %v244 = vunpack.c.l.b16 %v205
    %v245 = vunpack.c.l.b16 %v206
    %v246 = vunpack.c.l.b16 %v207
    %v247 = vunpack.c.l.b16 %v208
    %v248 = vunpack.c.l.b16 %v209
    %v249 = vpack.c.b16 %v234, %v233
    %v250 = vpack.c.b16 %v236, %v235
    %v251 = vpack.c.b16 %v238, %v237
    %v252 = vpack.c.b16 %v240, %v239
    %v253 = vpack.c.b16 %v242, %v241
    %v254 = vpack.c.b16 %v244, %v243
    %v255 = vpack.c.b16 %v246, %v245
    %v256 = vpack.c.b16 %v248, %v247
    %265 = vmatprep.subr.bf16.mxu0 0
    %266 = vmatpush1.bf16.msra.mxu0 %v249
    %267 = vmatprep.subr.bf16.mxu0 0
    %268 = vmatpush1.bf16.msra.mxu0 %v250
    %269 = vmatprep.subr.bf16.mxu0 0
    %270 = vmatpush1.bf16.msra.mxu0 %v251
    %271 = vmatprep.subr.bf16.mxu0 0
    %272 = vmatpush1.bf16.msra.mxu0 %v252
    %273 = vmatprep.subr.bf16.mxu0 0
    %274 = vmatpush1.bf16.msra.mxu0 %v253
    %275 = vmatprep.subr.bf16.mxu0 0
    %276 = vmatpush1.bf16.msra.mxu0 %v254
    %277 = vmatprep.subr.bf16.mxu0 0
    %278 = vmatpush1.bf16.msra.mxu0 %v255
    %279 = vmatprep.subr.bf16.mxu0 0
    %280 = vmatpush1.bf16.msra.mxu0 %v256
    %281 = vmatprep.subr.bf16.mxu0 0
    %282 = vmatpush1.bf16.msra.mxu0 0
    %283 = vmatprep.subr.bf16.mxu0 0
    %284 = vmatpush1.bf16.msra.mxu0 0
    %285 = vmatprep.subr.bf16.mxu0 0
    %286 = vmatpush1.bf16.msra.mxu0 0
    %287 = vmatprep.subr.bf16.mxu0 0
    %288 = vmatpush1.bf16.msra.mxu0 0
    %289 = vmatprep.subr.bf16.mxu0 0
    %290 = vmatpush1.bf16.msra.mxu0 0
    %291 = vmatprep.subr.bf16.mxu0 0
    %292 = vmatpush1.bf16.msra.mxu0 0
    %293 = vmatprep.subr.bf16.mxu0 0
    %294 = vmatpush1.bf16.msra.mxu0 0
    %295 = vmatprep.subr.bf16.mxu0 0
    %296 = vmatpush1.bf16.msra.mxu0 0
    %297 = vmatprep.mubr.bf16.mxu0 0
    %298 = vmatmul.mubr.bf16.gmra.mrb[0].mxu0 %v190
    %v299 = vpop.f32.mrb[0].mxu0
    %v300 = vadd.f32 %v215, %v299
    %v301 = vpop.f32.mrb[0].mxu0
    %v302 = vpop.f32.mrb[0].mxu0
    %v303 = vadd.f32 %v215, %v302
    %v304 = vpop.f32.mrb[0].mxu0
    %305 = vmatprep.mubr.bf16.mxu0 0
    %306 = vmatmul.mubr.bf16.gmra.mrb[0].mxu0 %v191
    %v307 = vpop.f32.mrb[0].mxu0
    %v308 = vadd.f32 %v215, %v307
    %v309 = vpop.f32.mrb[0].mxu0
    %v310 = vpop.f32.mrb[0].mxu0
    %v311 = vadd.f32 %v215, %v310
    %v312 = vpop.f32.mrb[0].mxu0
    %313 = vmatprep.mubr.bf16.mxu0 0
    %314 = vmatmul.mubr.bf16.gmra.mrb[0].mxu0 %v192
    %v315 = vpop.f32.mrb[0].mxu0
    %v316 = vadd.f32 %v215, %v315
    %v317 = vpop.f32.mrb[0].mxu0
    %v318 = vpop.f32.mrb[0].mxu0
    %v319 = vadd.f32 %v215, %v318
    %v320 = vpop.f32.mrb[0].mxu0
    %321 = vmatprep.mubr.bf16.mxu0 0
    %322 = vmatmul.mubr.bf16.gmra.mrb[0].mxu0 %v193
    %v323 = vpop.f32.mrb[0].mxu0
    %v324 = vadd.f32 %v215, %v323
    %v325 = vpop.f32.mrb[0].mxu0
    %v326 = vpop.f32.mrb[0].mxu0
    %v327 = vadd.f32 %v215, %v326
    %v328 = vpop.f32.mrb[0].mxu0
    %329 = vdwg.mxu0
    %v330 = vmax.f32 %v300, 0.0
    %v331 = vmax.f32 %v303, 0.0
    %v332 = vmax.f32 %v308, 0.0
    %v333 = vmax.f32 %v311, 0.0
    %v334 = vmax.f32 %v316, 0.0
    %v335 = vmax.f32 %v319, 0.0
    %v336 = vmax.f32 %v324, 0.0
    %v337 = vmax.f32 %v327, 0.0
    %v338 = vpack.c.bf16 %v331, %v330
    %v339 = vpack.c.bf16 %v333, %v332
    %v340 = vpack.c.bf16 %v335, %v334
    %v341 = vpack.c.bf16 %v337, %v336
    %v342 = vld [vmem:[#allocation2] sm:$0xf]
    %v343 = vld [vmem:[#allocation2 + $0x4] sm:$0xf]
    %v344 = vld [vmem:[#allocation2 + $0x8] sm:$0xf]
    %v345 = vld [vmem:[#allocation2 + $0xc] sm:$0xf]
    %v346 = vld [vmem:[#allocation2 + $0x10] sm:$0xf]
    %v347 = vld [vmem:[#allocation2 + $0x14] sm:$0xf]
    %v348 = vld [vmem:[#allocation2 + $0x18] sm:$0xf]
    %v349 = vld [vmem:[#allocation2 + $0x1c] sm:$0xf]
    %v350 = vld [vmem:[#allocation2 + $0x20] sm:$0xf]
    %v351 = vld [vmem:[#allocation2 + $0x24] sm:$0xf]
    %v352 = vld [vmem:[#allocation2 + $0x28] sm:$0xf]
    %v353 = vld [vmem:[#allocation2 + $0x2c] sm:$0xf]
    %v354 = vld [vmem:[#allocation2 + $0x30] sm:$0xf]
    %v355 = vld [vmem:[#allocation2 + $0x34] sm:$0xf]
    %v356 = vld [vmem:[#allocation2 + $0x38] sm:$0xf]
    %v357 = vld [vmem:[#allocation2 + $0x3c] sm:$0xf]
    %v358 = vld [vmem:[%s6] sm:$0x1]
    %v360 = vlaneseq
    %v361 = vshrl.u32 %v360, 7
    %v362 = vsub.s32 0, %v361
    %v363 = vrot.slane %v358, %v362
    %v381 = vunpack.c.l.b16 %v342
    %v382 = vunpack.c.l.b16 %v343
    %v383 = vunpack.c.l.b16 %v344
    %v384 = vunpack.c.l.b16 %v345
    %v385 = vunpack.c.l.b16 %v346
    %v386 = vunpack.c.l.b16 %v347
    %v387 = vunpack.c.l.b16 %v348
    %v388 = vunpack.c.l.b16 %v349
    %v389 = vunpack.c.l.b16 %v350
    %v390 = vunpack.c.l.b16 %v351
    %v391 = vunpack.c.l.b16 %v352
    %v392 = vunpack.c.l.b16 %v353
    %v393 = vunpack.c.l.b16 %v354
    %v394 = vunpack.c.l.b16 %v355
    %v395 = vunpack.c.l.b16 %v356
    %v396 = vunpack.c.l.b16 %v357
    %v397 = vpack.c.b16 %v382, %v381
    %v398 = vpack.c.b16 %v384, %v383
    %v399 = vpack.c.b16 %v386, %v385
    %v400 = vpack.c.b16 %v388, %v387
    %v401 = vpack.c.b16 %v390, %v389
    %v402 = vpack.c.b16 %v392, %v391
    %v403 = vpack.c.b16 %v394, %v393
    %v404 = vpack.c.b16 %v396, %v395
    %413 = vmatprep.subr.bf16.mxu0 0
    %414 = vmatpush1.bf16.msra.mxu0 %v397
    %415 = vmatprep.subr.bf16.mxu0 0
    %416 = vmatpush1.bf16.msra.mxu0 %v398
    %417 = vmatprep.subr.bf16.mxu0 0
    %418 = vmatpush1.bf16.msra.mxu0 %v399
    %419 = vmatprep.subr.bf16.mxu0 0
    %420 = vmatpush1.bf16.msra.mxu0 %v400
    %421 = vmatprep.subr.bf16.mxu0 0
    %422 = vmatpush1.bf16.msra.mxu0 %v401
    %423 = vmatprep.subr.bf16.mxu0 0
    %424 = vmatpush1.bf16.msra.mxu0 %v402
    %425 = vmatprep.subr.bf16.mxu0 0
    %426 = vmatpush1.bf16.msra.mxu0 %v403
    %427 = vmatprep.subr.bf16.mxu0 0
    %428 = vmatpush1.bf16.msra.mxu0 %v404
    %429 = vmatprep.subr.bf16.mxu0 0
    %430 = vmatpush1.bf16.msra.mxu0 0
    %431 = vmatprep.subr.bf16.mxu0 0
    %432 = vmatpush1.bf16.msra.mxu0 0
    %433 = vmatprep.subr.bf16.mxu0 0
    %434 = vmatpush1.bf16.msra.mxu0 0
    %435 = vmatprep.subr.bf16.mxu0 0
    %436 = vmatpush1.bf16.msra.mxu0 0
    %437 = vmatprep.subr.bf16.mxu0 0
    %438 = vmatpush1.bf16.msra.mxu0 0
    %439 = vmatprep.subr.bf16.mxu0 0
    %440 = vmatpush1.bf16.msra.mxu0 0
    %441 = vmatprep.subr.bf16.mxu0 0
    %442 = vmatpush1.bf16.msra.mxu0 0
    %443 = vmatprep.subr.bf16.mxu0 0
    %444 = vmatpush1.bf16.msra.mxu0 0
    %445 = vmatprep.mubr.bf16.mxu0 0
    %446 = vmatmul.mubr.bf16.gmra.mrb[0].mxu0 %v338
    %v447 = vpop.f32.mrb[0].mxu0
    %v448 = vadd.f32 %v363, %v447
    %v449 = vpop.f32.mrb[0].mxu0
    %v450 = vpop.f32.mrb[0].mxu0
    %v451 = vadd.f32 %v363, %v450
    %v452 = vpop.f32.mrb[0].mxu0
    %453 = vmatprep.mubr.bf16.mxu0 0
    %454 = vmatmul.mubr.bf16.gmra.mrb[0].mxu0 %v339
    %v455 = vpop.f32.mrb[0].mxu0
    %v456 = vadd.f32 %v363, %v455
    %v457 = vpop.f32.mrb[0].mxu0
    %v458 = vpop.f32.mrb[0].mxu0
    %v459 = vadd.f32 %v363, %v458
    %v460 = vpop.f32.mrb[0].mxu0
    %461 = vmatprep.mubr.bf16.mxu0 0
    %462 = vmatmul.mubr.bf16.gmra.mrb[0].mxu0 %v340
    %v463 = vpop.f32.mrb[0].mxu0
    %v464 = vadd.f32 %v363, %v463
    %v465 = vpop.f32.mrb[0].mxu0
    %v466 = vpop.f32.mrb[0].mxu0
    %v467 = vadd.f32 %v363, %v466
    %v468 = vpop.f32.mrb[0].mxu0
    %469 = vmatprep.mubr.bf16.mxu0 0
    %470 = vmatmul.mubr.bf16.gmra.mrb[0].mxu0 %v341
    %v471 = vpop.f32.mrb[0].mxu0
    %v472 = vadd.f32 %v363, %v471
    %v473 = vpop.f32.mrb[0].mxu0
    %v474 = vpop.f32.mrb[0].mxu0
    %v475 = vadd.f32 %v363, %v474
    %v476 = vpop.f32.mrb[0].mxu0
    %477 = vdwg.mxu0
    %v478 = vmax.f32 %v448, 0.0
    %v479 = vmax.f32 %v451, 0.0
    %v480 = vmax.f32 %v456, 0.0
    %v481 = vmax.f32 %v459, 0.0
    %v482 = vmax.f32 %v464, 0.0
    %v483 = vmax.f32 %v467, 0.0
    %v484 = vmax.f32 %v472, 0.0
    %v485 = vmax.f32 %v475, 0.0
    %v486 = vpack.c.bf16 %v479, %v478
    %v487 = vpack.c.bf16 %v481, %v480
    %v488 = vpack.c.bf16 %v483, %v482
    %v489 = vpack.c.bf16 %v485, %v484
    %v490 = vld [vmem:[#allocation4] sm:$0xf]
    %v491 = vld [vmem:[#allocation4 + $0x4] sm:$0xf]
    %v492 = vld [vmem:[#allocation4 + $0x8] sm:$0xf]
    %v493 = vld [vmem:[#allocation4 + $0xc] sm:$0xf]
    %v494 = vld [vmem:[#allocation4 + $0x10] sm:$0xf]
    %v495 = vld [vmem:[#allocation4 + $0x14] sm:$0xf]
    %v496 = vld [vmem:[#allocation4 + $0x18] sm:$0xf]
    %v497 = vld [vmem:[#allocation4 + $0x1c] sm:$0xf]
    %v498 = vld [vmem:[#allocation4 + $0x20] sm:$0xf]
    %v499 = vld [vmem:[#allocation4 + $0x24] sm:$0xf]
    %v500 = vld [vmem:[#allocation4 + $0x28] sm:$0xf]
    %v501 = vld [vmem:[#allocation4 + $0x2c] sm:$0xf]
    %v502 = vld [vmem:[#allocation4 + $0x30] sm:$0xf]
    %v503 = vld [vmem:[#allocation4 + $0x34] sm:$0xf]
    %v504 = vld [vmem:[#allocation4 + $0x38] sm:$0xf]
    %v505 = vld [vmem:[#allocation4 + $0x3c] sm:$0xf]
    %v506 = vld [vmem:[%s8] sm:$0x1]
    %v508 = vlaneseq
    %v509 = vshrl.u32 %v508, 7
    %v510 = vsub.s32 0, %v509
    %v511 = vrot.slane %v506, %v510
    %v529 = vunpack.c.l.b16 %v490
    %v530 = vunpack.c.l.b16 %v491
    %v531 = vunpack.c.l.b16 %v492
    %v532 = vunpack.c.l.b16 %v493
    %v533 = vunpack.c.l.b16 %v494
    %v534 = vunpack.c.l.b16 %v495
    %v535 = vunpack.c.l.b16 %v496
    %v536 = vunpack.c.l.b16 %v497
    %v537 = vunpack.c.l.b16 %v498
    %v538 = vunpack.c.l.b16 %v499
    %v539 = vunpack.c.l.b16 %v500
    %v540 = vunpack.c.l.b16 %v501
    %v541 = vunpack.c.l.b16 %v502
    %v542 = vunpack.c.l.b16 %v503
    %v543 = vunpack.c.l.b16 %v504
    %v544 = vunpack.c.l.b16 %v505
    %v545 = vpack.c.b16 %v530, %v529
    %v546 = vpack.c.b16 %v532, %v531
    %v547 = vpack.c.b16 %v534, %v533
    %v548 = vpack.c.b16 %v536, %v535
    %v549 = vpack.c.b16 %v538, %v537
    %v550 = vpack.c.b16 %v540, %v539
    %v551 = vpack.c.b16 %v542, %v541
    %v552 = vpack.c.b16 %v544, %v543
    %561 = vmatprep.subr.bf16.mxu0 0
    %562 = vmatpush1.bf16.msra.mxu0 %v545
    %563 = vmatprep.subr.bf16.mxu0 0
    %564 = vmatpush1.bf16.msra.mxu0 %v546
    %565 = vmatprep.subr.bf16.mxu0 0
    %566 = vmatpush1.bf16.msra.mxu0 %v547
    %567 = vmatprep.subr.bf16.mxu0 0
    %568 = vmatpush1.bf16.msra.mxu0 %v548
    %569 = vmatprep.subr.bf16.mxu0 0
    %570 = vmatpush1.bf16.msra.mxu0 %v549
    %571 = vmatprep.subr.bf16.mxu0 0
    %572 = vmatpush1.bf16.msra.mxu0 %v550
    %573 = vmatprep.subr.bf16.mxu0 0
    %574 = vmatpush1.bf16.msra.mxu0 %v551
    %575 = vmatprep.subr.bf16.mxu0 0
    %576 = vmatpush1.bf16.msra.mxu0 %v552
    %577 = vmatprep.subr.bf16.mxu0 0
    %578 = vmatpush1.bf16.msra.mxu0 0
    %579 = vmatprep.subr.bf16.mxu0 0
    %580 = vmatpush1.bf16.msra.mxu0 0
    %581 = vmatprep.subr.bf16.mxu0 0
    %582 = vmatpush1.bf16.msra.mxu0 0
    %583 = vmatprep.subr.bf16.mxu0 0
    %584 = vmatpush1.bf16.msra.mxu0 0
    %585 = vmatprep.subr.bf16.mxu0 0
    %586 = vmatpush1.bf16.msra.mxu0 0
    %587 = vmatprep.subr.bf16.mxu0 0
    %588 = vmatpush1.bf16.msra.mxu0 0
    %589 = vmatprep.subr.bf16.mxu0 0
    %590 = vmatpush1.bf16.msra.mxu0 0
    %591 = vmatprep.subr.bf16.mxu0 0
    %592 = vmatpush1.bf16.msra.mxu0 0
    %593 = vmatprep.mubr.bf16.mxu0 0
    %594 = vmatmul.mubr.bf16.gmra.mrb[0].mxu0 %v486
    %v595 = vpop.f32.mrb[0].mxu0
    %v596 = vadd.f32 %v511, %v595
    %v597 = vpop.f32.mrb[0].mxu0
    %v598 = vpop.f32.mrb[0].mxu0
    %v599 = vadd.f32 %v511, %v598
    %v600 = vpop.f32.mrb[0].mxu0
    %601 = vmatprep.mubr.bf16.mxu0 0
    %602 = vmatmul.mubr.bf16.gmra.mrb[0].mxu0 %v487
    %v603 = vpop.f32.mrb[0].mxu0
    %v604 = vadd.f32 %v511, %v603
    %v605 = vpop.f32.mrb[0].mxu0
    %v606 = vpop.f32.mrb[0].mxu0
    %v607 = vadd.f32 %v511, %v606
    %v608 = vpop.f32.mrb[0].mxu0
    %609 = vmatprep.mubr.bf16.mxu0 0
    %610 = vmatmul.mubr.bf16.gmra.mrb[0].mxu0 %v488
    %v611 = vpop.f32.mrb[0].mxu0
    %v612 = vadd.f32 %v511, %v611
    %v613 = vpop.f32.mrb[0].mxu0
    %v614 = vpop.f32.mrb[0].mxu0
    %v615 = vadd.f32 %v511, %v614
    %v616 = vpop.f32.mrb[0].mxu0
    %617 = vmatprep.mubr.bf16.mxu0 0
    %618 = vmatmul.mubr.bf16.gmra.mrb[0].mxu0 %v489
    %v619 = vpop.f32.mrb[0].mxu0
    %v620 = vadd.f32 %v511, %v619
    %v621 = vpop.f32.mrb[0].mxu0
    %v622 = vpop.f32.mrb[0].mxu0
    %v623 = vadd.f32 %v511, %v622
    %v624 = vpop.f32.mrb[0].mxu0
    %625 = vdwg.mxu0
    %626 = vst [vmem:[%s9] sm:$0xff] %v596
    %627 = vst [vmem:[%s9 + $0x8] sm:$0xff] %v599
    %628 = vst [vmem:[%s9 + $0x10] sm:$0xff] %v604
    %629 = vst [vmem:[%s9 + $0x18] sm:$0xff] %v607
    %630 = vst [vmem:[%s9 + $0x20] sm:$0xff] %v612
    %631 = vst [vmem:[%s9 + $0x28] sm:$0xff] %v615
    %632 = vst [vmem:[%s9 + $0x30] sm:$0xff] %v620
    %633 = vst [vmem:[%s9 + $0x38] sm:$0xff] %v623
    // Predicated region
    $region46: #{dueling_dqn_forward.1} parent=1 // pred_check
      _
    $region47: #{dueling_dqn_forward.1} parent=1 // pred_check_branch
      %635 = sbr.rel (0) target = $region49
    $region48: #{dueling_dqn_forward.1} parent=1 // pred_region
      _
    $region49: #{dueling_dqn_forward.1} parent=1 // pred_fallthru
      _
    // Predicated region
    $region50: #{dueling_dqn_forward.1} parent=1 // pred_check
      _
    $region51: #{dueling_dqn_forward.1} parent=1 // pred_check_branch
      %637 = sbr.rel (0) target = $region53
    $region52: #{dueling_dqn_forward.1} parent=1 // pred_region
      _
    $region53: #{dueling_dqn_forward.1} parent=1 // pred_fallthru
      _
    %638 = vsyncpa [#allocation3], 1
    %639 = vsyncpa [#allocation5], 1

</llo_original>
